<compile_context>
chip_gen: v7x
topology: tpu7x:2x2x1
jax: 0.10.0
libtpu: 0.0.40
codegen_flags: <defaults>
</compile_context>

<pallas_src>
import jax
import jax.numpy as jnp
from jax import lax
from jax.experimental import pallas as pl
from jax.experimental.pallas import tpu as pltpu


# ---------------------------------------------------------------------------
# Hardware-aware budgets / defaults
# ---------------------------------------------------------------------------
def _vmem_limit_bytes():
    try:
        cap = int(getattr(pltpu.get_tpu_info(), "vmem_capacity_bytes",
                          128 * 1024 * 1024))
    except Exception:
        cap = 128 * 1024 * 1024
    # v5e/v6e: 128 MiB physical -> 64 MiB limit; v7x: 64 MiB physical -> 48 MiB.
    return min((cap * 3) // 4, 64 * 1024 * 1024)


def _default_compute_dtype():
    # v5e has no f32 VPU FMA and a bf16 MXU peak: default matmul operands to
    # bf16 there (f32 accumulation / epilogue either way).
    try:
        kind = jax.devices()[0].device_kind.lower()
    except Exception:
        return jnp.float32
    return jnp.bfloat16 if ("v5 lite" in kind or "v5e" in kind) else jnp.float32


def _choose_tile_h(H, N, fixed_bytes, per_row_bytes, budget_bytes):
    """Largest TH (multiple of 8 dividing H, or H itself) whose per-step
    working set fits the budget; prefers >= ~4 total pipeline steps."""
    cands = sorted({d for d in range(8, H + 1, 8) if H % d == 0} | {H},
                   reverse=True)
    fit = [d for d in cands if fixed_bytes + d * per_row_bytes <= budget_bytes]
    if not fit:
        need = (fixed_bytes + cands[-1] * per_row_bytes) / 2**20
        raise ValueError(
            f"ResBlock tile needs ~{need:.1f} MiB VMEM even at the smallest H "
            f"tile (budget {budget_bytes / 2**20:.1f} MiB); shape too large for "
            "this kernel configuration.")
    th = fit[0]
    min_tiles = max(1, -(-4 // max(N, 1)))          # aim for >= ~4 grid steps
    if H // th < min_tiles:
        deeper = [d for d in fit if H // d >= min_tiles]
        if deeper:
            th = deeper[0]
    return th


# ---------------------------------------------------------------------------
# Weight preparation (call once and reuse for repeated inference)
# ---------------------------------------------------------------------------
def _band_weights(w_hwio, W, dtype):
    """Fold the 3-tap sliding window along W (incl. zero padding) into one
    block-banded (W*Cin, W*Cout) matrix per kernel row kh."""
    KH, KW, _, _ = w_hwio.shape
    bands = []
    for kh in range(KH):
        b = sum(jnp.kron(jnp.eye(W, k=1 - kw, dtype=w_hwio.dtype),
                         w_hwio[kh, kw]) for kw in range(KW))
        bands.append(b)
    return jnp.stack(bands).astype(dtype)


def prepare_resblock_weights(w1, b1, w2, b2, W, *, per_tap, compute_dtype):
    """Kernel-ready weights/biases.  The banded kron construction is
    O((W*C)^2); precompute this once per (W, dtype) for repeated inference."""
    cin, cout = w1.shape[2], w1.shape[3]
    if per_tap:
        w1p = w1.astype(compute_dtype).reshape(9, cin, cout)
        w2p = w2.astype(compute_dtype).reshape(9, cout, cout)
        b1p = b1.astype(jnp.float32).reshape(1, cout)
        b2p = b2.astype(jnp.float32).reshape(1, cout)
    else:
        w1p = _band_weights(w1.astype(jnp.float32), W, compute_dtype)
        w2p = _band_weights(w2.astype(jnp.float32), W, compute_dtype)
        b1p = jnp.tile(b1.astype(jnp.float32), W).reshape(1, W * cout)
        b2p = jnp.tile(b2.astype(jnp.float32), W).reshape(1, W * cout)
    return w1p, b1p, w2p, b2p


def _edge_halos(x_tiles, halo_rows, dtype):
    """x_tiles: (N, num_ht, rows_per_tile, K) -> (N, num_ht, 2*halo_rows, K)
    holding [last halo_rows rows of the previous tile ; first halo_rows rows of
    the next tile], zero at the image boundary."""
    N, nt, rpt, K = x_tiles.shape
    zeros = jnp.zeros((N, 1, halo_rows, K), dtype)
    if nt == 1:
        top, bot = zeros, zeros
    else:
        top = jnp.concatenate([zeros, x_tiles[:, :-1, rpt - halo_rows:, :]],
                              axis=1)
        bot = jnp.concatenate([x_tiles[:, 1:, :halo_rows, :], zeros], axis=1)
    return jnp.concatenate([top, bot], axis=2)


# ---------------------------------------------------------------------------
# Kernels
# ---------------------------------------------------------------------------
def _make_banded_kernel(H, TH, wcin, wcout, compute_dtype):
    cdt = compute_dtype

    def kernel(rs_ref, x_ref, halo_ref, w1_ref, b1_ref, w2_ref, b2_ref,
               out_ref, xe_ref):
        ht = pl.program_id(1)
        x_t = x_ref[0]                        # (TH, W*Cin)
        halo = halo_ref[0, 0]                 # (4, W*Cin)
        x32 = x_t.astype(jnp.float32)         # residual branch, f32 epilogue

        # Single staging copy: splice the 2-row halos around the tile (also the
        # one-time cast when compute_dtype != io dtype).  No zero-fill needed.
        xe_ref[0:2, :] = halo[0:2, :].astype(cdt)
        xe_ref[2:TH + 2, :] = x_t.astype(cdt)
        xe_ref[TH + 2:TH + 4, :] = halo[2:4, :].astype(cdt)

        # conv1 over TH+2 intermediate rows (1-row halo for conv2); bias folded
        # into the accumulator; the W window / padding lives in the band matrix.
        acc1 = jnp.broadcast_to(b1_ref[0:1, :], (TH + 2, wcout)).astype(jnp.float32)
        for kh in range(3):
            acc1 = acc1 + jnp.dot(xe_ref[kh:kh + TH + 2, :], w1_ref[kh],
                                  preferred_element_type=jnp.float32)
        h1 = jnp.maximum(acc1, 0.0)

        # conv2's zero padding applies to the *intermediate* map at the image
        # boundary: zero the halo rows that fall outside [0, H).
        p = lax.broadcasted_iota(jnp.int32, (TH + 2, 1), 0)
        img_row = ht * TH - 1 + p
        h1 = jnp.where((img_row >= 0) & (img_row < H), h1, 0.0)
        h1c = h1.astype(cdt)

        # conv2 straight from the h1 value: no second staging buffer.
        acc2 = jnp.broadcast_to(b2_ref[0:1, :], (TH, wcout)).astype(jnp.float32)
        for kh in range(3):
            acc2 = acc2 + jnp.dot(h1c[kh:kh + TH, :], w2_ref[kh],
                                  preferred_element_type=jnp.float32)

        out_ref[0] = (acc2 * rs_ref[0, 0] + x32).astype(out_ref.dtype)

    return kernel


def _make_pertap_kernel(H, TH, W, cin, cout, compute_dtype):
    cdt = compute_dtype
    M1 = (TH + 2) * W           # intermediate rows (with 1-row H halo), W cols
    M2 = TH * W                 # output rows

    def kernel(rs_ref, x_ref, halo_ref, w1_ref, b1_ref, w2_ref, b2_ref,
               out_ref, xe_ref, he_ref):
        ht = pl.program_id(1)
        x_t = x_ref[0]                        # (TH*W, Cin)
        halo = halo_ref[0, 0]                 # (4*W, Cin)
        x32 = x_t.astype(jnp.float32)

        # Stage conv1 input: [1 pad row | top halo (2W) | tile | bottom halo
        # (2W) | 1 pad row].  The extra rows absorb the +/-1 column shift of the
        # corner taps (whose wrapped contributions are masked out below).
        xe_ref[0:1, :] = jnp.zeros((1, cin), cdt)
        xe_ref[1:2 * W + 1, :] = halo[0:2 * W, :].astype(cdt)
        xe_ref[2 * W + 1:2 * W + 1 + TH * W, :] = x_t.astype(cdt)
        o = 2 * W + 1 + TH * W
        xe_ref[o:o + 2 * W, :] = halo[2 * W:4 * W, :].astype(cdt)
        xe_ref[o + 2 * W:o + 2 * W + 1, :] = jnp.zeros((1, cin), cdt)

        m1 = lax.broadcasted_iota(jnp.int32, (M1, 1), 0)
        col1 = m1 % W
        mask1 = {0: (col1 != 0).astype(jnp.float32),        # left tap at col 0
                 2: (col1 != W - 1).astype(jnp.float32)}    # right tap at col W-1

        # conv1: 9 per-tap matmuls with K = Cin (dense MXU when Cin >= 128).
        acc1 = jnp.broadcast_to(b1_ref[0:1, :], (M1, cout)).astype(jnp.float32)
        for kh in range(3):
            for kw in range(3):
                off = kh * W + kw
                c = jnp.dot(xe_ref[off:off + M1, :], w1_ref[kh * 3 + kw],
                            preferred_element_type=jnp.float32)
                if kw in mask1:
                    c = c * mask1[kw]
                acc1 = acc1 + c
        h1 = jnp.maximum(acc1, 0.0)

        # Zero intermediate rows outside the image (conv2's H zero-padding).
        img_row = ht * TH - 1 + m1 // W
        h1 = jnp.where((img_row >= 0) & (img_row < H), h1, 0.0)

        he_ref[0:1, :] = jnp.zeros((1, cout), cdt)
        he_ref[1:M1 + 1, :] = h1.astype(cdt)
        he_ref[M1 + 1:M1 + 2, :] = jnp.zeros((1, cout), cdt)

        m2 = lax.broadcasted_iota(jnp.int32, (M2, 1), 0)
        col2 = m2 % W
        mask2 = {0: (col2 != 0).astype(jnp.float32),
                 2: (col2 != W - 1).astype(jnp.float32)}

        acc2 = jnp.broadcast_to(b2_ref[0:1, :], (M2, cout)).astype(jnp.float32)
        for kh in range(3):
            for kw in range(3):
                off = kh * W + kw
                c = jnp.dot(he_ref[off:off + M2, :], w2_ref[kh * 3 + kw],
                            preferred_element_type=jnp.float32)
                if kw in mask2:
                    c = c * mask2[kw]
                acc2 = acc2 + c

        out_ref[0] = (acc2 * rs_ref[0, 0] + x32).astype(out_ref.dtype)

    return kernel


# ---------------------------------------------------------------------------
# Wrappers
# ---------------------------------------------------------------------------
def resblock_pallas_nhwc(x_nhwc, w1, b1, w2, b2, res_scale=1.0, *,
                         compute_dtype=None, io_dtype=jnp.float32,
                         force_per_tap=None, prepared_weights=None):
    """ResBlock forward, channels-last.

    x_nhwc: (N, H, W, C); w1/w2: (3, 3, C, C) HWIO; b1/b2: (C,).
    compute_dtype: matmul operand dtype (f32 accumulation & epilogue always).
    io_dtype: activation HBM dtype (opt-in bf16 for bandwidth-bound shapes).
    """
    N, H, W, Cin = x_nhwc.shape
    Cout = w1.shape[-1]
    assert Cin == Cout, "residual add requires in_channels == out_channels"
    assert w1.shape == (3, 3, Cin, Cout) and w2.shape == (3, 3, Cout, Cout)

    if compute_dtype is None:
        compute_dtype = _default_compute_dtype()
    cd = jnp.dtype(compute_dtype).itemsize
    iod = jnp.dtype(io_dtype).itemsize
    wcin, wcout = W * Cin, W * Cout

    # Path choice: banded only pays for tiny channel counts / small W*C.
    per_tap = (force_per_tap if force_per_tap is not None
               else (Cin >= 128 or wcin > 512))

    vmem_limit = _vmem_limit_bytes()
    budget = int(vmem_limit * 0.85)

    # Per-step VMEM estimate INCLUDING f32 temporaries (acc1/h1/acc2, residual)
    # and staging scratch; weights double-buffered by the default pipeline.
    if per_tap:
        fixed = (2 * 2 * 9 * Cin * Cout * cd            # both convs' weights x2
                 + 2 * 2 * 4 * W * Cin * iod            # halo blocks x2
                 + (1 << 20))                           # slack
        per_row = W * (2 * (Cin + Cout) * iod           # x/out blocks x2
                       + Cin * cd + Cout * cd           # xe / he scratch
                       + Cin * 4                        # residual f32
                       + 3 * Cout * 4)                  # acc1 / h1 / acc2 f32
    else:
        fixed = (2 * 3 * (wcin * wcout + wcout * wcout) * cd
                 + 2 * 2 * 4 * wcin * iod
                 + (1 << 20))
        per_row = (2 * (wcin + wcout) * iod
                   + wcin * cd + wcout * cd
                   + wcin * 4
                   + 3 * wcout * 4)

    TH = _choose_tile_h(H, N, fixed, per_row, budget)
    num_ht = H // TH

    if prepared_weights is None:
        prepared_weights = prepare_resblock_weights(
            w1, b1, w2, b2, W, per_tap=per_tap, compute_dtype=compute_dtype)
    w1p, b1p, w2p, b2p = prepared_weights
    rs = jnp.full((1, 1), res_scale, jnp.float32)

    cparams = pltpu.CompilerParams(
        dimension_semantics=("parallel", "parallel"),   # N and H tiles across TCs
        vmem_limit_bytes=vmem_limit)

    if per_tap:
        x_flat = x_nhwc.reshape(N, H * W, Cin).astype(io_dtype)
        x_tiles = x_flat.reshape(N, num_ht, TH * W, Cin)
        halos = _edge_halos(x_tiles, 2 * W, io_dtype)
        kernel = _make_pertap_kernel(H, TH, W, Cin, Cout, compute_dtype)
        out_flat = pl.pallas_call(
            kernel,
            out_shape=jax.ShapeDtypeStruct((N, H * W, Cout), io_dtype),
            grid_spec=pltpu.PrefetchScalarGridSpec(
                num_scalar_prefetch=0,
                grid=(N, num_ht),
                in_specs=[
                    pl.BlockSpec(memory_space=pltpu.MemorySpace.SMEM),      # res_scale
                    pl.BlockSpec((1, TH * W, Cin), lambda n, h: (n, h, 0)), # x (also residual)
                    pl.BlockSpec((1, 1, 4 * W, Cin), lambda n, h: (n, h, 0, 0)),
                    pl.BlockSpec((9, Cin, Cout), lambda n, h: (0, 0, 0)),
                    pl.BlockSpec((1, Cout), lambda n, h: (0, 0)),
                    pl.BlockSpec((9, Cout, Cout), lambda n, h: (0, 0, 0)),
                    pl.BlockSpec((1, Cout), lambda n, h: (0, 0)),
                ],
                out_specs=pl.BlockSpec((1, TH * W, Cout), lambda n, h: (n, h, 0)),
                scratch_shapes=[
                    pltpu.VMEM(((TH + 4) * W + 2, Cin), compute_dtype),
                    pltpu.VMEM(((TH + 2) * W + 2, Cout), compute_dtype),
                ]),
            compiler_params=cparams,
        )(rs, x_flat, halos, w1p, b1p, w2p, b2p)
        return out_flat.reshape(N, H, W, Cout)

    x_flat = x_nhwc.reshape(N, H, wcin).astype(io_dtype)
    x_tiles = x_flat.reshape(N, num_ht, TH, wcin)
    halos = _edge_halos(x_tiles, 2, io_dtype)
    kernel = _make_banded_kernel(H, TH, wcin, wcout, compute_dtype)
    out_flat = pl.pallas_call(
        kernel,
        out_shape=jax.ShapeDtypeStruct((N, H, wcout), io_dtype),
        grid_spec=pltpu.PrefetchScalarGridSpec(
            num_scalar_prefetch=0,
            grid=(N, num_ht),
            in_specs=[
                pl.BlockSpec(memory_space=pltpu.MemorySpace.SMEM),          # res_scale
                pl.BlockSpec((1, TH, wcin), lambda n, h: (n, h, 0)),        # x (also residual)
                pl.BlockSpec((1, 1, 4, wcin), lambda n, h: (n, h, 0, 0)),   # H halos
                pl.BlockSpec((3, wcin, wcout), lambda n, h: (0, 0, 0)),     # conv1 bands
                pl.BlockSpec((1, wcout), lambda n, h: (0, 0)),              # b1 (tiled over W)
                pl.BlockSpec((3, wcout, wcout), lambda n, h: (0, 0, 0)),    # conv2 bands
                pl.BlockSpec((1, wcout), lambda n, h: (0, 0)),              # b2
            ],
            out_specs=pl.BlockSpec((1, TH, wcout), lambda n, h: (n, h, 0)),
            scratch_shapes=[pltpu.VMEM((TH + 4, wcin), compute_dtype)]),
        compiler_params=cparams,
    )(rs, x_flat, halos, w1p, b1p, w2p, b2p)
    return out_flat.reshape(N, H, W, Cout)


def resblock_pallas(x_nchw, w1, b1, w2, b2, res_scale=1.0, **kwargs):
    """NCHW wrapper matching the PyTorch module's layout.  Prefer the NHWC
    entry point end-to-end to avoid the two full-tensor layout transposes."""
    x_nhwc = jnp.transpose(x_nchw, (0, 2, 3, 1))
    out = resblock_pallas_nhwc(x_nhwc, w1, b1, w2, b2, res_scale, **kwargs)
    return jnp.transpose(out, (0, 3, 1, 2))


def _reference(x_nchw, w1, b1, w2, b2, res_scale):
    """Pure-JAX reference (NHWC conv via lax) for correctness checking."""
    x = jnp.transpose(x_nchw, (0, 2, 3, 1))
    dn = lax.conv_dimension_numbers(x.shape, w1.shape, ("NHWC", "HWIO", "NHWC"))
    h = lax.conv_general_dilated(x, w1, (1, 1), ((1, 1), (1, 1)),
                                 dimension_numbers=dn) + b1
    h = jnp.maximum(h, 0.0)
    o = lax.conv_general_dilated(h, w2, (1, 1), ((1, 1), (1, 1)),
                                 dimension_numbers=dn) + b2
    o = o * res_scale + x
    return jnp.transpose(o, (0, 3, 1, 2))


if __name__ == "__main__":
    key = jax.random.PRNGKey(0)
    k_x, k_w1, k_b1, k_w2, k_b2 = jax.random.split(key, 5)

    N, C, H, W = 2, 4, 16, 16          # in_channels == out_channels (residual add)
    res_scale = 0.5

    x = jax.random.normal(k_x, (N, C, H, W), jnp.float32)
    w1 = jax.random.normal(k_w1, (3, 3, C, C), jnp.float32) * 0.1
    b1 = jax.random.normal(k_b1, (C,), jnp.float32) * 0.1
    w2 = jax.random.normal(k_w2, (3, 3, C, C), jnp.float32) * 0.1
    b2 = jax.random.normal(k_b2, (C,), jnp.float32) * 0.1

    ref = _reference(x, w1, b1, w2, b2, res_scale)

    # Banded path (auto-selected for small C), f32 operands, H-tiled grid.
    out = jax.block_until_ready(
        resblock_pallas(x, w1, b1, w2, b2, res_scale,
                        compute_dtype=jnp.float32))
    assert out.shape == (N, C, H, W)
    assert jnp.allclose(out, ref, atol=1e-4, rtol=1e-4), "banded f32 mismatch"

    # Per-tap K=C path (production path for C >= 128), forced here to validate.
    out_pt = jax.block_until_ready(
        resblock_pallas(x, w1, b1, w2, b2, res_scale,
                        compute_dtype=jnp.float32, force_per_tap=True))
    assert jnp.allclose(out_pt, ref, atol=1e-4, rtol=1e-4), "per-tap f32 mismatch"

    # bf16 matmul operands (f32 accumulation / epilogue), looser tolerance.
    out_bf = jax.block_until_ready(
        resblock_pallas(x, w1, b1, w2, b2, res_scale,
                        compute_dtype=jnp.bfloat16))
    assert jnp.allclose(out_bf, ref, atol=5e-2, rtol=5e-2), "banded bf16 mismatch"

    out_pt_bf = jax.block_until_ready(
        resblock_pallas(x, w1, b1, w2, b2, res_scale,
                        compute_dtype=jnp.bfloat16, force_per_tap=True))
    assert jnp.allclose(out_pt_bf, ref, atol=5e-2, rtol=5e-2), "per-tap bf16 mismatch"

    print("KERNEL_OK")
</pallas_src>

<mosaic_0001>
module attributes {stable_mosaic.version = 11 : i64} {
  func.func @kernel(%arg0: i32, %arg1: i32, %arg2: memref<1x1xf32, #tpu.memory_space<smem>>, %arg3: memref<1x8x64xf32, #tpu.memory_space<vmem>>, %arg4: memref<1x1x4x64xf32, #tpu.memory_space<vmem>>, %arg5: memref<3x64x64xf32, #tpu.memory_space<vmem>>, %arg6: memref<1x64xf32, #tpu.memory_space<vmem>>, %arg7: memref<3x64x64xf32, #tpu.memory_space<vmem>>, %arg8: memref<1x64xf32, #tpu.memory_space<vmem>>, %arg9: memref<1x8x64xf32, #tpu.memory_space<vmem>>, %arg10: memref<12x64xf32, #tpu.memory_space<vmem>>) attributes {dimension_semantics = [#tpu.dimension_semantics<parallel>, #tpu.dimension_semantics<parallel>], iteration_bounds = array<i64: 2, 2>, scalar_prefetch = 0 : i64, scratch_operands = 1 : i64, tpu.core_type = #tpu.core_type<tc>, window_params = [{transform_indices = @transform_0, window_bounds = array<i64: 1, 1>}, {transform_indices = @transform_1, window_bounds = array<i64: 1, 8, 64>}, {transform_indices = @transform_2, window_bounds = array<i64: 1, 1, 4, 64>}, {pipeline_mode = #tpu.pipeline_mode<synchronous>, transform_indices = @transform_3, window_bounds = array<i64: 3, 64, 64>}, {pipeline_mode = #tpu.pipeline_mode<synchronous>, transform_indices = @transform_4, window_bounds = array<i64: 1, 64>}, {pipeline_mode = #tpu.pipeline_mode<synchronous>, transform_indices = @transform_5, window_bounds = array<i64: 3, 64, 64>}, {pipeline_mode = #tpu.pipeline_mode<synchronous>, transform_indices = @transform_6, window_bounds = array<i64: 1, 64>}, {transform_indices = @transform_7, window_bounds = array<i64: 1, 8, 64>}]} {
    %c0 = arith.constant 0 : index
    %c0_0 = arith.constant 0 : index
    %c0_1 = arith.constant 0 : index
    %0 = vector.load %arg3[%c0, %c0_0, %c0_1] : memref<1x8x64xf32, #tpu.memory_space<vmem>>, vector<1x8x64xf32>
    %1 = vector.shape_cast %0 : vector<1x8x64xf32> to vector<8x64xf32>
    %c0_2 = arith.constant 0 : index
    %c0_3 = arith.constant 0 : index
    %c0_4 = arith.constant 0 : index
    %c0_5 = arith.constant 0 : index
    %2 = vector.load %arg4[%c0_2, %c0_3, %c0_4, %c0_5] : memref<1x1x4x64xf32, #tpu.memory_space<vmem>>, vector<1x1x4x64xf32>
    %3 = vector.shape_cast %2 : vector<1x1x4x64xf32> to vector<4x64xf32>
    %4 = vector.extract_strided_slice %3 {offsets = [0, 0], sizes = [2, 64], strides = [1, 1]} : vector<4x64xf32> to vector<2x64xf32>
    %c0_6 = arith.constant 0 : index
    %c0_7 = arith.constant 0 : index
    %5 = vector.load %arg10[%c0_6, %c0_7] : memref<12x64xf32, #tpu.memory_space<vmem>>, vector<2x64xf32>
    tpu.vector_store %arg10[%c0_6, %c0_7], %4 {strides = array<i32>} : memref<12x64xf32, #tpu.memory_space<vmem>>, vector<2x64xf32>,
    %c2 = arith.constant 2 : index
    %c0_8 = arith.constant 0 : index
    %6 = vector.load %arg10[%c2, %c0_8] : memref<12x64xf32, #tpu.memory_space<vmem>>, vector<8x64xf32>
    tpu.vector_store %arg10[%c2, %c0_8], %1 {strides = array<i32>} : memref<12x64xf32, #tpu.memory_space<vmem>>, vector<8x64xf32>,
    %7 = vector.extract_strided_slice %3 {offsets = [2, 0], sizes = [2, 64], strides = [1, 1]} : vector<4x64xf32> to vector<2x64xf32>
    %c10 = arith.constant 10 : index
    %c0_9 = arith.constant 0 : index
    %8 = vector.load %arg10[%c10, %c0_9] : memref<12x64xf32, #tpu.memory_space<vmem>>, vector<2x64xf32>
    tpu.vector_store %arg10[%c10, %c0_9], %7 {strides = array<i32>} : memref<12x64xf32, #tpu.memory_space<vmem>>, vector<2x64xf32>,
    %c0_10 = arith.constant 0 : index
    %c0_11 = arith.constant 0 : index
    %9 = vector.load %arg6[%c0_10, %c0_11] : memref<1x64xf32, #tpu.memory_space<vmem>>, vector<1x64xf32>
    %10 = vector.shape_cast %9 : vector<1x64xf32> to vector<1x64xf32>
    %11 = vector.broadcast %10 : vector<1x64xf32> to vector<10x64xf32>
    %c0_12 = arith.constant 0 : index
    %c0_13 = arith.constant 0 : index
    %12 = vector.load %arg10[%c0_12, %c0_13] : memref<12x64xf32, #tpu.memory_space<vmem>>, vector<10x64xf32>
    %c0_14 = arith.constant 0 : index
    %c0_15 = arith.constant 0 : index
    %c0_16 = arith.constant 0 : index
    %13 = vector.load %arg5[%c0_14, %c0_15, %c0_16] : memref<3x64x64xf32, #tpu.memory_space<vmem>>, vector<1x64x64xf32>
    %14 = vector.shape_cast %13 : vector<1x64x64xf32> to vector<64x64xf32>
    %cst = arith.constant dense<0.000000e+00> : vector<10x64xf32>
    %15 = tpu.matmul %12, %14, %cst {dimension_numbers = #tpu.dot_dimension_numbers<[1], [0], [0], [1], [0, 0, 1, 1], [], []>} : vector<10x64xf32>, vector<64x64xf32>, vector<10x64xf32> -> vector<10x64xf32>
    %16 = arith.addf %11, %15 : vector<10x64xf32>
    %c1 = arith.constant 1 : index
    %c0_17 = arith.constant 0 : index
    %17 = vector.load %arg10[%c1, %c0_17] : memref<12x64xf32, #tpu.memory_space<vmem>>, vector<10x64xf32>
    %c1_18 = arith.constant 1 : index
    %c0_19 = arith.constant 0 : index
    %c0_20 = arith.constant 0 : index
    %18 = vector.load %arg5[%c1_18, %c0_19, %c0_20] : memref<3x64x64xf32, #tpu.memory_space<vmem>>, vector<1x64x64xf32>
    %19 = vector.shape_cast %18 : vector<1x64x64xf32> to vector<64x64xf32>
    %cst_21 = arith.constant dense<0.000000e+00> : vector<10x64xf32>
    %20 = tpu.matmul %17, %19, %cst_21 {dimension_numbers = #tpu.dot_dimension_numbers<[1], [0], [0], [1], [0, 0, 1, 1], [], []>} : vector<10x64xf32>, vector<64x64xf32>, vector<10x64xf32> -> vector<10x64xf32>
    %21 = arith.addf %16, %20 : vector<10x64xf32>
    %c2_22 = arith.constant 2 : index
    %c0_23 = arith.constant 0 : index
    %22 = vector.load %arg10[%c2_22, %c0_23] : memref<12x64xf32, #tpu.memory_space<vmem>>, vector<10x64xf32>
    %c2_24 = arith.constant 2 : index
    %c0_25 = arith.constant 0 : index
    %c0_26 = arith.constant 0 : index
    %23 = vector.load %arg5[%c2_24, %c0_25, %c0_26] : memref<3x64x64xf32, #tpu.memory_space<vmem>>, vector<1x64x64xf32>
    %24 = vector.shape_cast %23 : vector<1x64x64xf32> to vector<64x64xf32>
    %cst_27 = arith.constant dense<0.000000e+00> : vector<10x64xf32>
    %25 = tpu.matmul %22, %24, %cst_27 {dimension_numbers = #tpu.dot_dimension_numbers<[1], [0], [0], [1], [0, 0, 1, 1], [], []>} : vector<10x64xf32>, vector<64x64xf32>, vector<10x64xf32> -> vector<10x64xf32>
    %26 = arith.addf %21, %25 : vector<10x64xf32>
    %cst_28 = arith.constant 0.000000e+00 : f32
    %27 = vector.broadcast %cst_28 : f32 to vector<10x64xf32>
    %28 = arith.maximumf %26, %27 : vector<10x64xf32>
    %29 = tpu.iota {dimensions = array<i32: 0>} : vector<10x1xi32>
    %c8_i32 = arith.constant 8 : i32
    %30 = arith.muli %arg1, %c8_i32 : i32
    %c1_i32 = arith.constant 1 : i32
    %31 = arith.subi %30, %c1_i32 : i32
    %32 = vector.broadcast %31 : i32 to vector<10x1xi32>
    %33 = arith.addi %32, %29 : vector<10x1xi32>
    %c0_i32 = arith.constant 0 : i32
    %34 = vector.broadcast %c0_i32 : i32 to vector<10x1xi32>
    %35 = arith.cmpi sge, %33, %34 : vector<10x1xi32>
    %c16_i32 = arith.constant 16 : i32
    %36 = vector.broadcast %c16_i32 : i32 to vector<10x1xi32>
    %37 = arith.cmpi slt, %33, %36 : vector<10x1xi32>
    %38 = arith.andi %35, %37 : vector<10x1xi1>
    %cst_29 = arith.constant 0.000000e+00 : f32
    %39 = vector.shape_cast %38 : vector<10x1xi1> to vector<10x1xi1>
    %40 = vector.broadcast %39 : vector<10x1xi1> to vector<10x64xi1>
    %41 = vector.broadcast %cst_29 : f32 to vector<10x64xf32>
    %42 = arith.select %40, %28, %41 : vector<10x64xi1>, vector<10x64xf32>
    %c0_30 = arith.constant 0 : index
    %c0_31 = arith.constant 0 : index
    %43 = vector.load %arg8[%c0_30, %c0_31] : memref<1x64xf32, #tpu.memory_space<vmem>>, vector<1x64xf32>
    %44 = vector.shape_cast %43 : vector<1x64xf32> to vector<1x64xf32>
    %45 = vector.broadcast %44 : vector<1x64xf32> to vector<8x64xf32>
    %46 = vector.extract_strided_slice %42 {offsets = [0, 0], sizes = [8, 64], strides = [1, 1]} : vector<10x64xf32> to vector<8x64xf32>
    %c0_32 = arith.constant 0 : index
    %c0_33 = arith.constant 0 : index
    %c0_34 = arith.constant 0 : index
    %47 = vector.load %arg7[%c0_32, %c0_33, %c0_34] : memref<3x64x64xf32, #tpu.memory_space<vmem>>, vector<1x64x64xf32>
    %48 = vector.shape_cast %47 : vector<1x64x64xf32> to vector<64x64xf32>
    %cst_35 = arith.constant dense<0.000000e+00> : vector<8x64xf32>
    %49 = tpu.matmul %46, %48, %cst_35 {dimension_numbers = #tpu.dot_dimension_numbers<[1], [0], [0], [1], [0, 0, 1, 1], [], []>} : vector<8x64xf32>, vector<64x64xf32>, vector<8x64xf32> -> vector<8x64xf32>
    %50 = arith.addf %45, %49 : vector<8x64xf32>
    %51 = vector.extract_strided_slice %42 {offsets = [1, 0], sizes = [8, 64], strides = [1, 1]} : vector<10x64xf32> to vector<8x64xf32>
    %c1_36 = arith.constant 1 : index
    %c0_37 = arith.constant 0 : index
    %c0_38 = arith.constant 0 : index
    %52 = vector.load %arg7[%c1_36, %c0_37, %c0_38] : memref<3x64x64xf32, #tpu.memory_space<vmem>>, vector<1x64x64xf32>
    %53 = vector.shape_cast %52 : vector<1x64x64xf32> to vector<64x64xf32>
    %cst_39 = arith.constant dense<0.000000e+00> : vector<8x64xf32>
    %54 = tpu.matmul %51, %53, %cst_39 {dimension_numbers = #tpu.dot_dimension_numbers<[1], [0], [0], [1], [0, 0, 1, 1], [], []>} : vector<8x64xf32>, vector<64x64xf32>, vector<8x64xf32> -> vector<8x64xf32>
    %55 = arith.addf %50, %54 : vector<8x64xf32>
    %56 = vector.extract_strided_slice %42 {offsets = [2, 0], sizes = [8, 64], strides = [1, 1]} : vector<10x64xf32> to vector<8x64xf32>
    %c2_40 = arith.constant 2 : index
    %c0_41 = arith.constant 0 : index
    %c0_42 = arith.constant 0 : index
    %57 = vector.load %arg7[%c2_40, %c0_41, %c0_42] : memref<3x64x64xf32, #tpu.memory_space<vmem>>, vector<1x64x64xf32>
    %58 = vector.shape_cast %57 : vector<1x64x64xf32> to vector<64x64xf32>
    %cst_43 = arith.constant dense<0.000000e+00> : vector<8x64xf32>
    %59 = tpu.matmul %56, %58, %cst_43 {dimension_numbers = #tpu.dot_dimension_numbers<[1], [0], [0], [1], [0, 0, 1, 1], [], []>} : vector<8x64xf32>, vector<64x64xf32>, vector<8x64xf32> -> vector<8x64xf32>
    %60 = arith.addf %55, %59 : vector<8x64xf32>
    %c0_44 = arith.constant 0 : index
    %c0_45 = arith.constant 0 : index
    %61 = memref.load %arg2[%c0_44, %c0_45] : memref<1x1xf32, #tpu.memory_space<smem>>
    %62 = vector.broadcast %61 : f32 to vector<8x64xf32>
    %63 = arith.mulf %60, %62 : vector<8x64xf32>
    %64 = arith.addf %63, %1 : vector<8x64xf32>
    %c0_46 = arith.constant 0 : index
    %c0_47 = arith.constant 0 : index
    %c0_48 = arith.constant 0 : index
    %65 = vector.load %arg9[%c0_46, %c0_47, %c0_48] : memref<1x8x64xf32, #tpu.memory_space<vmem>>, vector<1x8x64xf32>
    %66 = vector.shape_cast %65 : vector<1x8x64xf32> to vector<8x64xf32>
    %67 = vector.shape_cast %64 : vector<8x64xf32> to vector<1x8x64xf32>
    tpu.vector_store %arg9[%c0_46, %c0_47, %c0_48], %67 {strides = array<i32>} : memref<1x8x64xf32, #tpu.memory_space<vmem>>, vector<1x8x64xf32>,
    return
  }
  func.func @transform_0(%arg0: i32, %arg1: i32) -> (i32, i32) {
    %c0_i32 = arith.constant 0 : i32
    %c0_i32_0 = arith.constant 0 : i32
    %c0_i32_1 = arith.constant 0 : i32
    return %c0_i32, %c0_i32_0 : i32, i32
  }
  func.func @transform_1(%arg0: i32, %arg1: i32) -> (i32, i32, i32) {
    %c0_i32 = arith.constant 0 : i32
    %c0_i32_0 = arith.constant 0 : i32
    return %arg0, %arg1, %c0_i32 : i32, i32, i32
  }
  func.func @transform_2(%arg0: i32, %arg1: i32) -> (i32, i32, i32, i32) {
    %c0_i32 = arith.constant 0 : i32
    %c0_i32_0 = arith.constant 0 : i32
    %c0_i32_1 = arith.constant 0 : i32
    return %arg0, %arg1, %c0_i32, %c0_i32_0 : i32, i32, i32, i32
  }
  func.func @transform_3(%arg0: i32, %arg1: i32) -> (i32, i32, i32) {
    %c0_i32 = arith.constant 0 : i32
    %c0_i32_0 = arith.constant 0 : i32
    %c0_i32_1 = arith.constant 0 : i32
    %c0_i32_2 = arith.constant 0 : i32
    return %c0_i32, %c0_i32_0, %c0_i32_1 : i32, i32, i32
  }
  func.func @transform_4(%arg0: i32, %arg1: i32) -> (i32, i32) {
    %c0_i32 = arith.constant 0 : i32
    %c0_i32_0 = arith.constant 0 : i32
    %c0_i32_1 = arith.constant 0 : i32
    return %c0_i32, %c0_i32_0 : i32, i32
  }
  func.func @transform_5(%arg0: i32, %arg1: i32) -> (i32, i32, i32) {
    %c0_i32 = arith.constant 0 : i32
    %c0_i32_0 = arith.constant 0 : i32
    %c0_i32_1 = arith.constant 0 : i32
    %c0_i32_2 = arith.constant 0 : i32
    return %c0_i32, %c0_i32_0, %c0_i32_1 : i32, i32, i32
  }
  func.func @transform_6(%arg0: i32, %arg1: i32) -> (i32, i32) {
    %c0_i32 = arith.constant 0 : i32
    %c0_i32_0 = arith.constant 0 : i32
    %c0_i32_1 = arith.constant 0 : i32
    return %c0_i32, %c0_i32_0 : i32, i32
  }
  func.func @transform_7(%arg0: i32, %arg1: i32) -> (i32, i32, i32) {
    %c0_i32 = arith.constant 0 : i32
    %c0_i32_0 = arith.constant 0 : i32
    return %arg0, %arg1, %c0_i32 : i32, i32, i32
  }
}

</mosaic_0001>

<llo_original>
// kernel: tpu_custom_call.1
$region0: #{tpu_custom_call.1}
  #allocation0 [shape = 'u32[]', space=smem, size = 0x4, offset = 0x4, fixed_abs, tag = 'smem constant byte address 0x4 - core index']
  #allocation1 [shape = 'u32[144,128]{1,0:T(1,128)}', space=vmem, size = 0x12000, scoped, tag = 'internal scratch']
  #allocation2 [shape = 'f32[12,64]{1,0:T(8,128)}', space=vmem, size = 0x2000, scoped, tag = 'scratch operand']
  #allocation3 [shape = 'f32[1,1]{1,0:T(1,128)S(6)}', space=smem, size = 0x200, scoped, tag = 'scoped memory for tpu_custom_call.1']
  %s0 = inlined_call_operand.<no memory space> [shape: f32[1,1], index: 0, kind: input, shape index: {}]
  %s1 = inlined_call_operand.hbm [shape: f32[2,16,64], index: 1, kind: input, shape index: {}]
  %s2 = inlined_call_operand.hbm [shape: f32[2,2,4,64], index: 2, kind: input, shape index: {}]
  %s3 = inlined_call_operand.hbm [shape: f32[3,64,64], index: 3, kind: input, shape index: {}]
  %s4 = inlined_call_operand.hbm [shape: f32[1,64], index: 4, kind: input, shape index: {}]
  %s5 = inlined_call_operand.hbm [shape: f32[3,64,64], index: 5, kind: input, shape index: {}]
  %s6 = inlined_call_operand.hbm [shape: f32[1,64], index: 6, kind: input, shape index: {}]
  %s7 = inlined_call_operand.hbm [shape: f32[2,16,64], index: 7, kind: output, shape index: {}]
  %s8 = sld [smem:[#allocation0]]
  $region85: #{tpu_custom_call.1} parent=0
    _
  %s10 = ssub.s32 1, %s8
  %s11 = scalar_select 0, %s10, %s8
  %12 = sst [smem:[#allocation3]] %s0
  $region1: #{tpu_custom_call.1} parent=0
    #allocation4 [shape = 'u8[8192]{0}', space=vmem, size = 0x2000, scoped, tag = 'input window, operand 1']
    #allocation5 [shape = 's32[2]{0}', space=sflag, size = 0x8, scoped, tag = 'scoped memory for tpu_custom_call.1']
    #allocation6 [shape = 's32[2]{0}', space=sflag, size = 0x8, scoped, tag = 'scoped memory for tpu_custom_call.1']
    #allocation7 [shape = 'u8[4096]{0}', space=vmem, size = 0x1000, scoped, tag = 'input window, operand 2']
    #allocation8 [shape = 's32[2]{0}', space=sflag, size = 0x8, scoped, tag = 'scoped memory for tpu_custom_call.1']
    #allocation9 [shape = 'u8[98304]{0}', space=vmem, size = 0x18000, scoped, tag = 'input window, operand 3, single buffered']
    #allocation10 [shape = 'u8[512]{0}', space=vmem, size = 0x400, scoped, tag = 'input window, operand 4, single buffered']
    #allocation11 [shape = 's32[1]{0}', space=sflag, size = 0x4, scoped, tag = 'scoped memory for tpu_custom_call.1']
    #allocation12 [shape = 'u8[98304]{0}', space=vmem, size = 0x18000, scoped, tag = 'input window, operand 5, single buffered']
    #allocation13 [shape = 'u8[512]{0}', space=vmem, size = 0x400, scoped, tag = 'input window, operand 6, single buffered']
    #allocation14 [shape = 's32[1]{0}', space=sflag, size = 0x4, scoped, tag = 'scoped memory for tpu_custom_call.1']
    #allocation15 [shape = 'u8[8192]{0}', space=vmem, size = 0x2000, scoped, tag = 'output window, operand 0']
    %13 = vsyncpa [#allocation5], 0
    %s14 = scalar_lea.sflag [#allocation5], 1
    %15 = vsyncpa %s14, 0
    %16 = vsyncpa [#allocation8], 0
    %s17 = scalar_lea.sflag [#allocation8], 1
    %18 = vsyncpa %s17, 0
    %19 = vsyncpa [#allocation11], 0
    %20 = vsyncpa [#allocation14], 0
    %21 = vsyncpa [#allocation6], 0
    %s22 = scalar_lea.sflag [#allocation6], 1
    %23 = vsyncpa %s22, 0
    loop: start=0, step=1, limit=6
    $region2: #{tpu_custom_call.1} parent=1 // loop_pre_header
      _
    $region3: #{tpu_custom_call.1} parent=1 // loop_header
      %s25 = sphi 0, %s29
      %p26 = scmp.ge.s32.totalorder %s25, 6
      %s32 = sphi 0, %s44
      %s33 = sphi 0, %s40
      %s34 = sphi 0, %s32
      %s35 = sphi 0, %s33
      %s36 = sphi 0, %s34
      %s37 = sphi 0, %s35
      %s45 = sphi 0, %s45
      %s47 = sphi 0, %s45
      %s48 = sphi 0, %s47
      %s62 = sphi 0, %s48
      %s70 = sphi 0, %s72
      %s73 = sphi 0, %s70
      %s74 = sphi 0, %s73
      %s90 = sphi 0, %s74
      %s98 = sphi 0, %s100
      %s101 = sphi 0, %s98
      %s102 = sphi 0, %s101
      %s118 = sphi 0, %s102
      %s122 = sphi 0, %s122
      %s124 = sphi 0, %s122
      %s125 = sphi 0, %s124
      %s139 = sphi 0, %s125
      %s143 = sphi 0, %s143
      %s145 = sphi 0, %s143
      %s146 = sphi 0, %s145
      %s160 = sphi 0, %s146
      %s164 = sphi 0, %s164
      %s166 = sphi 0, %s164
      %s167 = sphi 0, %s166
      %s181 = sphi 0, %s167
      %s185 = sphi 0, %s185
      %s187 = sphi 0, %s185
      %s188 = sphi 0, %s187
      %s202 = sphi 0, %s188
      %s210 = sphi 0, %s212
      %s213 = sphi 0, %s210
      %s214 = sphi 0, %s213
      %s230 = sphi 0, %s214
    $region4: #{tpu_custom_call.1} parent=1 // loop_header_branch
      %28 = sbr.rel (%p26) target = $region8
    $region5: #{tpu_custom_call.1} parent=1 // loop_body
      %s30 = ssub.s32 %s25, 1
      %s31 = ssub.s32 %s25, 2
      %s38 = sadd.s32 1, %s33
      %p39 = scmp.ge.s32.totalorder %s38, 2
      %s40 = scalar_select %p39, 0, %s38
      %s41 = sadd.s32 1, %s32
      %s42 = scalar_select %p39, %s41, %s32
      %p43 = scmp.ge.s32.totalorder %s42, 2
      %s44 = scalar_select %p43, 0, %s42
      %s46 = sadd.s32 %s45, 1
      %p49 = scmp.eq.s32.totalorder %s25, 3
      %p50 = scmp.ne.s32.totalorder %s45, %s47
      %p51 = scmp.eq.s32.totalorder %s25, 0
      %p52 = por %p50, %p51
      %p53 = scmp.ne.s32.totalorder %s45, %s47
      %p54 = scmp.eq.s32.totalorder %s30, 3
      %p55 = por %p53, %p54
      %p56 = scmp.ne.s32.totalorder %s47, %s48
      %p57 = scmp.eq.s32.totalorder %s30, 0
      %p58 = por %p56, %p57
      %p59 = scmp.ne.s32.totalorder %s47, %s48
      %p60 = scmp.eq.s32.totalorder %s31, 3
      %p61 = por %p59, %p60
      %p63 = scmp.ne.s32.totalorder %s48, %s62
      %p64 = scmp.eq.s32.totalorder %s31, 0
      %p65 = por %p63, %p64
      %s66 = ssub.s32 %s32, %s44
      %s67 = ssub.s32 %s33, %s40
      %s68 = sor.u32 %s66, %s67
      %p69 = scmp.eq.s32.totalorder %s68, 0
      %s71 = sadd.s32 %s70, 1
      %s72 = scalar_select %p69, %s70, %s71
      %p75 = pneg %p69
      %p76 = scmp.eq.s32.totalorder %s25, 3
      %p77 = por %p75, %p76
      %p78 = scmp.ne.s32.totalorder %s70, %s73
      %p79 = scmp.eq.s32.totalorder %s25, 0
      %p80 = por %p78, %p79
      %p81 = scmp.ne.s32.totalorder %s70, %s73
      %p82 = scmp.eq.s32.totalorder %s30, 3
      %p83 = por %p81, %p82
      %p84 = scmp.ne.s32.totalorder %s73, %s74
      %p85 = scmp.eq.s32.totalorder %s30, 0
      %p86 = por %p84, %p85
      %p87 = scmp.ne.s32.totalorder %s73, %s74
      %p88 = scmp.eq.s32.totalorder %s31, 3
      %p89 = por %p87, %p88
      %p91 = scmp.ne.s32.totalorder %s74, %s90
      %p92 = scmp.eq.s32.totalorder %s31, 0
      %p93 = por %p91, %p92
      %s94 = ssub.s32 %s32, %s44
      %s95 = ssub.s32 %s33, %s40
      %s96 = sor.u32 %s94, %s95
      %p97 = scmp.eq.s32.totalorder %s96, 0
      %s99 = sadd.s32 %s98, 1
      %s100 = scalar_select %p97, %s98, %s99
      %p103 = pneg %p97
      %p104 = scmp.eq.s32.totalorder %s25, 3
      %p105 = por %p103, %p104
      %p106 = scmp.ne.s32.totalorder %s98, %s101
      %p107 = scmp.eq.s32.totalorder %s25, 0
      %p108 = por %p106, %p107
      %p109 = scmp.ne.s32.totalorder %s98, %s101
      %p110 = scmp.eq.s32.totalorder %s30, 3
      %p111 = por %p109, %p110
      %p112 = scmp.ne.s32.totalorder %s101, %s102
      %p113 = scmp.eq.s32.totalorder %s30, 0
      %p114 = por %p112, %p113
      %p115 = scmp.ne.s32.totalorder %s101, %s102
      %p116 = scmp.eq.s32.totalorder %s31, 3
      %p117 = por %p115, %p116
      %p119 = scmp.ne.s32.totalorder %s102, %s118
      %p120 = scmp.eq.s32.totalorder %s31, 0
      %p121 = por %p119, %p120
      %s123 = sadd.s32 %s122, 1
      %p126 = scmp.eq.s32.totalorder %s25, 3
      %p127 = scmp.ne.s32.totalorder %s122, %s124
      %p128 = scmp.eq.s32.totalorder %s25, 0
      %p129 = por %p127, %p128
      %p130 = scmp.ne.s32.totalorder %s122, %s124
      %p131 = scmp.eq.s32.totalorder %s30, 3
      %p132 = por %p130, %p131
      %p133 = scmp.ne.s32.totalorder %s124, %s125
      %p134 = scmp.eq.s32.totalorder %s30, 0
      %p135 = por %p133, %p134
      %p136 = scmp.ne.s32.totalorder %s124, %s125
      %p137 = scmp.eq.s32.totalorder %s31, 3
      %p138 = por %p136, %p137
      %p140 = scmp.ne.s32.totalorder %s125, %s139
      %p141 = scmp.eq.s32.totalorder %s31, 0
      %p142 = por %p140, %p141
      %s144 = sadd.s32 %s143, 1
      %p147 = scmp.eq.s32.totalorder %s25, 3
      %p148 = scmp.ne.s32.totalorder %s143, %s145
      %p149 = scmp.eq.s32.totalorder %s25, 0
      %p150 = por %p148, %p149
      %p151 = scmp.ne.s32.totalorder %s143, %s145
      %p152 = scmp.eq.s32.totalorder %s30, 3
      %p153 = por %p151, %p152
      %p154 = scmp.ne.s32.totalorder %s145, %s146
      %p155 = scmp.eq.s32.totalorder %s30, 0
      %p156 = por %p154, %p155
      %p157 = scmp.ne.s32.totalorder %s145, %s146
      %p158 = scmp.eq.s32.totalorder %s31, 3
      %p159 = por %p157, %p158
      %p161 = scmp.ne.s32.totalorder %s146, %s160
      %p162 = scmp.eq.s32.totalorder %s31, 0
      %p163 = por %p161, %p162
      %s165 = sadd.s32 %s164, 1
      %p168 = scmp.eq.s32.totalorder %s25, 3
      %p169 = scmp.ne.s32.totalorder %s164, %s166
      %p170 = scmp.eq.s32.totalorder %s25, 0
      %p171 = por %p169, %p170
      %p172 = scmp.ne.s32.totalorder %s164, %s166
      %p173 = scmp.eq.s32.totalorder %s30, 3
      %p174 = por %p172, %p173
      %p175 = scmp.ne.s32.totalorder %s166, %s167
      %p176 = scmp.eq.s32.totalorder %s30, 0
      %p177 = por %p175, %p176
      %p178 = scmp.ne.s32.totalorder %s166, %s167
      %p179 = scmp.eq.s32.totalorder %s31, 3
      %p180 = por %p178, %p179
      %p182 = scmp.ne.s32.totalorder %s167, %s181
      %p183 = scmp.eq.s32.totalorder %s31, 0
      %p184 = por %p182, %p183
      %s186 = sadd.s32 %s185, 1
      %p189 = scmp.eq.s32.totalorder %s25, 3
      %p190 = scmp.ne.s32.totalorder %s185, %s187
      %p191 = scmp.eq.s32.totalorder %s25, 0
      %p192 = por %p190, %p191
      %p193 = scmp.ne.s32.totalorder %s185, %s187
      %p194 = scmp.eq.s32.totalorder %s30, 3
      %p195 = por %p193, %p194
      %p196 = scmp.ne.s32.totalorder %s187, %s188
      %p197 = scmp.eq.s32.totalorder %s30, 0
      %p198 = por %p196, %p197
      %p199 = scmp.ne.s32.totalorder %s187, %s188
      %p200 = scmp.eq.s32.totalorder %s31, 3
      %p201 = por %p199, %p200
      %p203 = scmp.ne.s32.totalorder %s188, %s202
      %p204 = scmp.eq.s32.totalorder %s31, 0
      %p205 = por %p203, %p204
      %s206 = ssub.s32 %s32, %s44
      %s207 = ssub.s32 %s33, %s40
      %s208 = sor.u32 %s206, %s207
      %p209 = scmp.eq.s32.totalorder %s208, 0
      %s211 = sadd.s32 %s210, 1
      %s212 = scalar_select %p209, %s210, %s211
      %p215 = pneg %p209
      %p216 = scmp.eq.s32.totalorder %s25, 3
      %p217 = por %p215, %p216
      %p218 = scmp.ne.s32.totalorder %s210, %s213
      %p219 = scmp.eq.s32.totalorder %s25, 0
      %p220 = por %p218, %p219
      %p221 = scmp.ne.s32.totalorder %s210, %s213
      %p222 = scmp.eq.s32.totalorder %s30, 3
      %p223 = por %p221, %p222
      %p224 = scmp.ne.s32.totalorder %s213, %s214
      %p225 = scmp.eq.s32.totalorder %s30, 0
      %p226 = por %p224, %p225
      %p227 = scmp.ne.s32.totalorder %s213, %s214
      %p228 = scmp.eq.s32.totalorder %s31, 3
      %p229 = por %p227, %p228
      %p231 = scmp.ne.s32.totalorder %s214, %s230
      %p232 = scmp.eq.s32.totalorder %s31, 0
      %p233 = por %p231, %p232
      %p234 = scmp.le.s32.totalorder 1, %s25
      %p235 = scmp.lt.s32.totalorder %s25, 5
      %p236 = pnand %p234, %p235
      %p237 = pneg %p236
      // Predicated region
      $region9: #{tpu_custom_call.1} parent=5 // pred_check
        _
      $region10: #{tpu_custom_call.1} parent=5 // pred_check_branch
        %239 = sbr.rel (%p236) target = $region12
      $region11: #{tpu_custom_call.1} parent=5 // pred_region
        %s240 = ssub.s32 %s25, 1
        // Predicated region
        $region13: #{tpu_custom_call.1} parent=11 // pred_check
          %p241 = pneg %p58
        $region14: #{tpu_custom_call.1} parent=11 // pred_check_branch
          %243 = sbr.rel (%p241) target = $region16
        $region15: #{tpu_custom_call.1} parent=11 // pred_region
          _
        $region16: #{tpu_custom_call.1} parent=11 // pred_fallthru
          _
        // Predicated region
        $region17: #{tpu_custom_call.1} parent=11 // pred_check
          %p244 = pneg %p135
        $region18: #{tpu_custom_call.1} parent=11 // pred_check_branch
          %246 = sbr.rel (%p244) target = $region20
        $region19: #{tpu_custom_call.1} parent=11 // pred_region
          %s248 = ssub.s32 3072, 3072
          %249 = vsyncadd [#allocation8], %s248
          %s250 = sshll.u32 [#allocation9], 4
          %s251 = int_to_ptr.vmem [resolvable:$true] %s250
          %256 = dma.hbm_to_vmem [thread:$0]  %s3, 3072, %s251, [#allocation8], 128, 128, 8
        $region20: #{tpu_custom_call.1} parent=11 // pred_fallthru
          _
        // Predicated region
        $region21: #{tpu_custom_call.1} parent=11 // pred_check
          %p257 = pneg %p156
        $region22: #{tpu_custom_call.1} parent=11 // pred_check_branch
          %259 = sbr.rel (%p257) target = $region24
        $region23: #{tpu_custom_call.1} parent=11 // pred_region
          %s261 = ssub.s32 16, 16
          %262 = vsyncadd [#allocation11], %s261
          %s264 = sshll.u32 [#allocation10], 4
          %s265 = int_to_ptr.vmem [resolvable:$true] %s264
          %267 = dma.hbm_to_vmem [thread:$0]  %s4, 16, %s265, [#allocation11]
        $region24: #{tpu_custom_call.1} parent=11 // pred_fallthru
          _
        // Predicated region
        $region25: #{tpu_custom_call.1} parent=11 // pred_check
          %p268 = pneg %p177
        $region26: #{tpu_custom_call.1} parent=11 // pred_check_branch
          %270 = sbr.rel (%p268) target = $region28
        $region27: #{tpu_custom_call.1} parent=11 // pred_region
          %s272 = ssub.s32 3072, 3072
          %273 = vsyncadd [#allocation11], %s272
          %s274 = sshll.u32 [#allocation12], 4
          %s275 = int_to_ptr.vmem [resolvable:$true] %s274
          %280 = dma.hbm_to_vmem [thread:$0]  %s5, 3072, %s275, [#allocation11], 128, 128, 8
        $region28: #{tpu_custom_call.1} parent=11 // pred_fallthru
          _
        // Predicated region
        $region29: #{tpu_custom_call.1} parent=11 // pred_check
          %p281 = pneg %p198
        $region30: #{tpu_custom_call.1} parent=11 // pred_check_branch
          %283 = sbr.rel (%p281) target = $region32
        $region31: #{tpu_custom_call.1} parent=11 // pred_region
          %s285 = ssub.s32 16, 16
          %286 = vsyncadd [#allocation14], %s285
          %s288 = sshll.u32 [#allocation13], 4
          %s289 = int_to_ptr.vmem [resolvable:$true] %s288
          %291 = dma.hbm_to_vmem [thread:$0]  %s6, 16, %s289, [#allocation14]
        $region32: #{tpu_custom_call.1} parent=11 // pred_fallthru
          _
      $region12: #{tpu_custom_call.1} parent=5 // pred_fallthru
        _
      %p292 = scmp.lt.s32.totalorder %s25, 4
      // Predicated region
      $region33: #{tpu_custom_call.1} parent=5 // pred_check
        %p293 = pneg %p292
      $region34: #{tpu_custom_call.1} parent=5 // pred_check_branch
        %295 = sbr.rel (%p293) target = $region36
      $region35: #{tpu_custom_call.1} parent=5 // pred_region
        // Predicated region
        $region37: #{tpu_custom_call.1} parent=35 // pred_check
          %p296 = pneg %p80
        $region38: #{tpu_custom_call.1} parent=35 // pred_check_branch
          %298 = sbr.rel (%p296) target = $region40
        $region39: #{tpu_custom_call.1} parent=35 // pred_region
          %s299 = sand.u32 %s70, 1
          %s300 = scalar_lea.sflag [#allocation5], %s299
          %s301 = sand.u32 %s70, 1
          %s302 = smul.addr %s301, 8
          %s303 = scalar_lea.vmem [#allocation4], %s302
          %s305 = ssub.s32 128, 128
          %306 = vsyncadd %s300, %s305
          %s307 = smul.addr %s32, 2
          %s308 = sadd.s32 %s33, %s307
          %s309 = smul.addr %s308, 128
          %s310 = scalar_lea.hbm %s1, %s309
          %s312 = sshll.u32 %s303, 4
          %s313 = int_to_ptr.vmem [resolvable:$true] %s312
          %315 = dma.hbm_to_vmem [thread:$0]  %s310, 128, %s313, %s300
        $region40: #{tpu_custom_call.1} parent=35 // pred_fallthru
          _
        // Predicated region
        $region41: #{tpu_custom_call.1} parent=35 // pred_check
          %p316 = pneg %p108
        $region42: #{tpu_custom_call.1} parent=35 // pred_check_branch
          %318 = sbr.rel (%p316) target = $region44
        $region43: #{tpu_custom_call.1} parent=35 // pred_region
          %s319 = sand.u32 %s25, 1
          %s320 = scalar_lea.sflag [#allocation8], %s319
          %s321 = sand.u32 %s98, 1
          %s322 = smul.addr %s321, 4
          %s323 = scalar_lea.vmem [#allocation7], %s322
          %s325 = ssub.s32 64, 64
          %326 = vsyncadd %s320, %s325
          %s327 = smul.addr %s32, 2
          %s328 = sadd.s32 %s33, %s327
          %s329 = smul.addr %s328, 64
          %s330 = scalar_lea.hbm %s2, %s329
          %s332 = sshll.u32 %s323, 4
          %s333 = int_to_ptr.vmem [resolvable:$true] %s332
          %335 = dma.hbm_to_vmem [thread:$0]  %s330, 64, %s333, %s320
        $region44: #{tpu_custom_call.1} parent=35 // pred_fallthru
          _
      $region36: #{tpu_custom_call.1} parent=5 // pred_fallthru
        _
      %p336 = scmp.le.s32.totalorder 1, %s25
      %p337 = scmp.lt.s32.totalorder %s25, 5
      %p338 = pnand %p336, %p337
      %p339 = pneg %p338
      // Predicated region
      $region45: #{tpu_custom_call.1} parent=5 // pred_check
        _
      $region46: #{tpu_custom_call.1} parent=5 // pred_check_branch
        %341 = sbr.rel (%p338) target = $region48
      $region47: #{tpu_custom_call.1} parent=5 // pred_region
        %s342 = ssub.s32 %s25, 1
        %s343 = sand.u32 %s73, 1
        %s344 = scalar_lea.sflag [#allocation5], %s343
        %s345 = sand.u32 %s73, 1
        %s346 = smul.addr %s345, 8
        %s347 = scalar_lea.vmem [#allocation4], %s346
        // Predicated region
        $region49: #{tpu_custom_call.1} parent=47 // pred_check
          %p348 = pneg %p86
        $region50: #{tpu_custom_call.1} parent=47 // pred_check_branch
          %350 = sbr.rel (%p348) target = $region52
        $region51: #{tpu_custom_call.1} parent=47 // pred_region
          %351 = dma.done %s344, 128
        $region52: #{tpu_custom_call.1} parent=47 // pred_fallthru
          _
        %s352 = sand.u32 %s30, 1
        %s353 = scalar_lea.sflag [#allocation8], %s352
        %s354 = sand.u32 %s101, 1
        %s355 = smul.addr %s354, 4
        %s356 = scalar_lea.vmem [#allocation7], %s355
        // Predicated region
        $region53: #{tpu_custom_call.1} parent=47 // pred_check
          %p357 = pneg %p114
        $region54: #{tpu_custom_call.1} parent=47 // pred_check_branch
          %359 = sbr.rel (%p357) target = $region56
        $region55: #{tpu_custom_call.1} parent=47 // pred_region
          %360 = dma.done %s353, 64
        $region56: #{tpu_custom_call.1} parent=47 // pred_fallthru
          _
        // Predicated region
        $region57: #{tpu_custom_call.1} parent=47 // pred_check
          %p361 = pneg %p135
        $region58: #{tpu_custom_call.1} parent=47 // pred_check_branch
          %363 = sbr.rel (%p361) target = $region60
        $region59: #{tpu_custom_call.1} parent=47 // pred_region
          %364 = dma.done [#allocation8], 3072
        $region60: #{tpu_custom_call.1} parent=47 // pred_fallthru
          _
        // Predicated region
        $region61: #{tpu_custom_call.1} parent=47 // pred_check
          %p365 = pneg %p156
        $region62: #{tpu_custom_call.1} parent=47 // pred_check_branch
          %367 = sbr.rel (%p365) target = $region64
        $region63: #{tpu_custom_call.1} parent=47 // pred_region
          %368 = dma.done [#allocation11], 16
        $region64: #{tpu_custom_call.1} parent=47 // pred_fallthru
          _
        // Predicated region
        $region65: #{tpu_custom_call.1} parent=47 // pred_check
          %p369 = pneg %p177
        $region66: #{tpu_custom_call.1} parent=47 // pred_check_branch
          %371 = sbr.rel (%p369) target = $region68
        $region67: #{tpu_custom_call.1} parent=47 // pred_region
          %372 = dma.done [#allocation11], 3072
        $region68: #{tpu_custom_call.1} parent=47 // pred_fallthru
          _
        // Predicated region
        $region69: #{tpu_custom_call.1} parent=47 // pred_check
          %p373 = pneg %p198
        $region70: #{tpu_custom_call.1} parent=47 // pred_check_branch
          %375 = sbr.rel (%p373) target = $region72
        $region71: #{tpu_custom_call.1} parent=47 // pred_region
          %376 = dma.done [#allocation14], 16
        $region72: #{tpu_custom_call.1} parent=47 // pred_fallthru
          _
        %p377 = pneg %p58
        %p378 = pneg %p55
        %s379 = sand.u32 %s73, 1
        %s380 = scalar_lea.sflag [#allocation5], %s379
        %s381 = sand.u32 %s73, 1
        %s382 = smul.addr %s381, 8
        %s383 = scalar_lea.vmem [#allocation4], %s382
        %p384 = pneg %p86
        %p385 = pneg %p83
        %s386 = sand.u32 %s30, 1
        %s387 = scalar_lea.sflag [#allocation8], %s386
        %s388 = sand.u32 %s101, 1
        %s389 = smul.addr %s388, 4
        %s390 = scalar_lea.vmem [#allocation7], %s389
        %p391 = pneg %p114
        %p392 = pneg %p111
        %p393 = pneg %p135
        %p394 = pneg %p132
        %p395 = pneg %p156
        %p396 = pneg %p153
        %p397 = pneg %p177
        %p398 = pneg %p174
        %p399 = pneg %p198
        %p400 = pneg %p195
        %p401 = pneg %p226
        %p402 = pneg %p223
        %s403 = sand.u32 %s213, 1
        %s404 = scalar_lea.sflag [#allocation6], %s403
        %s405 = sand.u32 %s213, 1
        %s406 = smul.addr %s405, 8
        %s407 = scalar_lea.vmem [#allocation15], %s406
        %v408 = vld [vmem:[%s347] sm:$0xff]
        %v409 = vld [vmem:[%s356] sm:$0xf]
        %vm410 = vcmask 517120
        %411 = vst.msk [vmem:[#allocation2] sm:$0x3] %vm410, %v409
        %vm412 = vcmask 523264
        %413 = vst.msk [vmem:[#allocation2 + $0x2] sm:$0xff] %vm412, %v408
        %vm414 = vcmask 519170
        %415 = vst.msk [vmem:[#allocation2 + $0x8] sm:$0xc] %vm414, %v409
        %v416 = vld [vmem:[#allocation10] sm:$0x1]
        %v418 = vlaneseq
        %v419 = vshrl.u32 %v418, 7
        %v420 = vsub.s32 0, %v419
        %v421 = vrot.slane %v416, %v420
        %v423 = vld [vmem:[#allocation2] sm:$0xff]
        %v424 = vld [vmem:[#allocation2 + $0x8] sm:$0x3]
        %v425 = vld [vmem:[#allocation9] sm:$0xff]
        %v426 = vld [vmem:[#allocation9 + $0x8] sm:$0xff]
        %v427 = vld [vmem:[#allocation9 + $0x10] sm:$0xff]
        %v428 = vld [vmem:[#allocation9 + $0x18] sm:$0xff]
        %v429 = vld [vmem:[#allocation9 + $0x20] sm:$0xff]
        %v430 = vld [vmem:[#allocation9 + $0x28] sm:$0xff]
        %v431 = vld [vmem:[#allocation9 + $0x30] sm:$0xff]
        %v432 = vld [vmem:[#allocation9 + $0x38] sm:$0xff]
        %v434 = vsel %vm412, %v423, 0
        %v437 = vsel %vm412, %v424, 0
        %439 = vmatprep.subr.mxu0 0.0
        %440 = vmatpush1.msra.mxu0 %v425
        %441 = vmatprep.subr.mxu0 0.0
        %442 = vmatpush1.msra.mxu0 %v426
        %443 = vmatprep.subr.mxu0 0.0
        %444 = vmatpush1.msra.mxu0 %v427
        %445 = vmatprep.subr.mxu0 0.0
        %446 = vmatpush1.msra.mxu0 %v428
        %447 = vmatprep.subr.mxu0 0.0
        %448 = vmatpush1.msra.mxu0 %v429
        %449 = vmatprep.subr.mxu0 0.0
        %450 = vmatpush1.msra.mxu0 %v430
        %451 = vmatprep.subr.mxu0 0.0
        %452 = vmatpush1.msra.mxu0 %v431
        %453 = vmatprep.subr.mxu0 0.0
        %454 = vmatpush1.msra.mxu0 %v432
        %455 = vmatprep.subr.mxu0 0.0
        %456 = vmatpush1.msra.mxu0 0.0
        %457 = vmatprep.subr.mxu0 0.0
        %458 = vmatpush1.msra.mxu0 0.0
        %459 = vmatprep.subr.mxu0 0.0
        %460 = vmatpush1.msra.mxu0 0.0
        %461 = vmatprep.subr.mxu0 0.0
        %462 = vmatpush1.msra.mxu0 0.0
        %463 = vmatprep.subr.mxu0 0.0
        %464 = vmatpush1.msra.mxu0 0.0
        %465 = vmatprep.subr.mxu0 0.0
        %466 = vmatpush1.msra.mxu0 0.0
        %467 = vmatprep.subr.mxu0 0.0
        %468 = vmatpush1.msra.mxu0 0.0
        %469 = vmatprep.subr.mxu0 0.0
        %470 = vmatpush1.msra.mxu0 0.0
        %471 = vmatprep.subr.mxu0 0.0
        %472 = vmatpush1.msra.mxu0 0.0
        %473 = vmatprep.subr.mxu0 0.0
        %474 = vmatpush1.msra.mxu0 0.0
        %475 = vmatprep.subr.mxu0 0.0
        %476 = vmatpush1.msra.mxu0 0.0
        %477 = vmatprep.subr.mxu0 0.0
        %478 = vmatpush1.msra.mxu0 0.0
        %479 = vmatprep.subr.mxu0 0.0
        %480 = vmatpush1.msra.mxu0 0.0
        %481 = vmatprep.subr.mxu0 0.0
        %482 = vmatpush1.msra.mxu0 0.0
        %483 = vmatprep.subr.mxu0 0.0
        %484 = vmatpush1.msra.mxu0 0.0
        %485 = vmatprep.subr.mxu0 0.0
        %486 = vmatpush1.msra.mxu0 0.0
        %487 = vmatprep.subr.mxu0 0.0
        %488 = vmatpush1.msra.mxu0 0.0
        %489 = vmatprep.subr.mxu0 0.0
        %490 = vmatpush1.msra.mxu0 0.0
        %491 = vmatprep.subr.mxu0 0.0
        %492 = vmatpush1.msra.mxu0 0.0
        %493 = vmatprep.subr.mxu0 0.0
        %494 = vmatpush1.msra.mxu0 0.0
        %495 = vmatprep.subr.mxu0 0.0
        %496 = vmatpush1.msra.mxu0 0.0
        %497 = vmatprep.subr.mxu0 0.0
        %498 = vmatpush1.msra.mxu0 0.0
        %499 = vmatprep.subr.mxu0 0.0
        %500 = vmatpush1.msra.mxu0 0.0
        %501 = vmatprep.subr.mxu0 0.0
        %502 = vmatpush1.msra.mxu0 0.0
        %503 = vmatprep.mubr.f32.mxu0 0.0
        %504 = vmatmul.mubr.f32.gmra.mrb[0].mxu0 %v434
        %v505 = vpop.f32.mrb[0].mxu0
        %v506 = vadd.f32 0.0, %v505
        %v507 = vpop.f32.mrb[0].mxu0
        %508 = vmatprep.mubr.f32.mxu0 0.0
        %509 = vmatmul.mubr.f32.gmra.mrb[0].mxu0 %v437
        %v510 = vpop.f32.mrb[0].mxu0
        %v511 = vadd.f32 0.0, %v510
        %v512 = vpop.f32.mrb[0].mxu0
        %513 = vdwg.mxu0
        %v514 = vadd.f32 %v421, %v506
        %v515 = vadd.f32 %v421, %v511
        %v516 = vld [vmem:[#allocation2 + $0x1] sm:$0xff]
        %v517 = vld [vmem:[#allocation2 + $0x9] sm:$0x3]
        %s518 = scalar_lea.vmem [#allocation9], 64
        %v519 = vld [vmem:[%s518] sm:$0xff]
        %v520 = vld [vmem:[%s518 + $0x8] sm:$0xff]
        %v521 = vld [vmem:[%s518 + $0x10] sm:$0xff]
        %v522 = vld [vmem:[%s518 + $0x18] sm:$0xff]
        %v523 = vld [vmem:[%s518 + $0x20] sm:$0xff]
        %v524 = vld [vmem:[%s518 + $0x28] sm:$0xff]
        %v525 = vld [vmem:[%s518 + $0x30] sm:$0xff]
        %v526 = vld [vmem:[%s518 + $0x38] sm:$0xff]
        %v528 = vsel %vm412, %v516, 0
        %v531 = vsel %vm412, %v517, 0
        %533 = vmatprep.subr.mxu0 0.0
        %534 = vmatpush1.msra.mxu0 %v519
        %535 = vmatprep.subr.mxu0 0.0
        %536 = vmatpush1.msra.mxu0 %v520
        %537 = vmatprep.subr.mxu0 0.0
        %538 = vmatpush1.msra.mxu0 %v521
        %539 = vmatprep.subr.mxu0 0.0
        %540 = vmatpush1.msra.mxu0 %v522
        %541 = vmatprep.subr.mxu0 0.0
        %542 = vmatpush1.msra.mxu0 %v523
        %543 = vmatprep.subr.mxu0 0.0
        %544 = vmatpush1.msra.mxu0 %v524
        %545 = vmatprep.subr.mxu0 0.0
        %546 = vmatpush1.msra.mxu0 %v525
        %547 = vmatprep.subr.mxu0 0.0
        %548 = vmatpush1.msra.mxu0 %v526
        %549 = vmatprep.subr.mxu0 0.0
        %550 = vmatpush1.msra.mxu0 0.0
        %551 = vmatprep.subr.mxu0 0.0
        %552 = vmatpush1.msra.mxu0 0.0
        %553 = vmatprep.subr.mxu0 0.0
        %554 = vmatpush1.msra.mxu0 0.0
        %555 = vmatprep.subr.mxu0 0.0
        %556 = vmatpush1.msra.mxu0 0.0
        %557 = vmatprep.subr.mxu0 0.0
        %558 = vmatpush1.msra.mxu0 0.0
        %559 = vmatprep.subr.mxu0 0.0
        %560 = vmatpush1.msra.mxu0 0.0
        %561 = vmatprep.subr.mxu0 0.0
        %562 = vmatpush1.msra.mxu0 0.0
        %563 = vmatprep.subr.mxu0 0.0
        %564 = vmatpush1.msra.mxu0 0.0
        %565 = vmatprep.subr.mxu0 0.0
        %566 = vmatpush1.msra.mxu0 0.0
        %567 = vmatprep.subr.mxu0 0.0
        %568 = vmatpush1.msra.mxu0 0.0
        %569 = vmatprep.subr.mxu0 0.0
        %570 = vmatpush1.msra.mxu0 0.0
        %571 = vmatprep.subr.mxu0 0.0
        %572 = vmatpush1.msra.mxu0 0.0
        %573 = vmatprep.subr.mxu0 0.0
        %574 = vmatpush1.msra.mxu0 0.0
        %575 = vmatprep.subr.mxu0 0.0
        %576 = vmatpush1.msra.mxu0 0.0
        %577 = vmatprep.subr.mxu0 0.0
        %578 = vmatpush1.msra.mxu0 0.0
        %579 = vmatprep.subr.mxu0 0.0
        %580 = vmatpush1.msra.mxu0 0.0
        %581 = vmatprep.subr.mxu0 0.0
        %582 = vmatpush1.msra.mxu0 0.0
        %583 = vmatprep.subr.mxu0 0.0
        %584 = vmatpush1.msra.mxu0 0.0
        %585 = vmatprep.subr.mxu0 0.0
        %586 = vmatpush1.msra.mxu0 0.0
        %587 = vmatprep.subr.mxu0 0.0
        %588 = vmatpush1.msra.mxu0 0.0
        %589 = vmatprep.subr.mxu0 0.0
        %590 = vmatpush1.msra.mxu0 0.0
        %591 = vmatprep.subr.mxu0 0.0
        %592 = vmatpush1.msra.mxu0 0.0
        %593 = vmatprep.subr.mxu0 0.0
        %594 = vmatpush1.msra.mxu0 0.0
        %595 = vmatprep.subr.mxu0 0.0
        %596 = vmatpush1.msra.mxu0 0.0
        %597 = vmatprep.mubr.f32.mxu0 0.0
        %598 = vmatmul.mubr.f32.gmra.mrb[0].mxu0 %v528
        %v599 = vpop.f32.mrb[0].mxu0
        %v600 = vadd.f32 0.0, %v599
        %v601 = vpop.f32.mrb[0].mxu0
        %602 = vmatprep.mubr.f32.mxu0 0.0
        %603 = vmatmul.mubr.f32.gmra.mrb[0].mxu0 %v531
        %v604 = vpop.f32.mrb[0].mxu0
        %v605 = vadd.f32 0.0, %v604
        %v606 = vpop.f32.mrb[0].mxu0
        %607 = vdwg.mxu0
        %v608 = vadd.f32 %v514, %v600
        %v609 = vadd.f32 %v515, %v605
        %v610 = vld [vmem:[#allocation2 + $0x2] sm:$0xff]
        %v611 = vld [vmem:[#allocation2 + $0xa] sm:$0x3]
        %s612 = scalar_lea.vmem [#allocation9], 128
        %v613 = vld [vmem:[%s612] sm:$0xff]
        %v614 = vld [vmem:[%s612 + $0x8] sm:$0xff]
        %v615 = vld [vmem:[%s612 + $0x10] sm:$0xff]
        %v616 = vld [vmem:[%s612 + $0x18] sm:$0xff]
        %v617 = vld [vmem:[%s612 + $0x20] sm:$0xff]
        %v618 = vld [vmem:[%s612 + $0x28] sm:$0xff]
        %v619 = vld [vmem:[%s612 + $0x30] sm:$0xff]
        %v620 = vld [vmem:[%s612 + $0x38] sm:$0xff]
        %v622 = vsel %vm412, %v610, 0
        %v625 = vsel %vm412, %v611, 0
        %627 = vmatprep.subr.mxu0 0.0
        %628 = vmatpush1.msra.mxu0 %v613
        %629 = vmatprep.subr.mxu0 0.0
        %630 = vmatpush1.msra.mxu0 %v614
        %631 = vmatprep.subr.mxu0 0.0
        %632 = vmatpush1.msra.mxu0 %v615
        %633 = vmatprep.subr.mxu0 0.0
        %634 = vmatpush1.msra.mxu0 %v616
        %635 = vmatprep.subr.mxu0 0.0
        %636 = vmatpush1.msra.mxu0 %v617
        %637 = vmatprep.subr.mxu0 0.0
        %638 = vmatpush1.msra.mxu0 %v618
        %639 = vmatprep.subr.mxu0 0.0
        %640 = vmatpush1.msra.mxu0 %v619
        %641 = vmatprep.subr.mxu0 0.0
        %642 = vmatpush1.msra.mxu0 %v620
        %643 = vmatprep.subr.mxu0 0.0
        %644 = vmatpush1.msra.mxu0 0.0
        %645 = vmatprep.subr.mxu0 0.0
        %646 = vmatpush1.msra.mxu0 0.0
        %647 = vmatprep.subr.mxu0 0.0
        %648 = vmatpush1.msra.mxu0 0.0
        %649 = vmatprep.subr.mxu0 0.0
        %650 = vmatpush1.msra.mxu0 0.0
        %651 = vmatprep.subr.mxu0 0.0
        %652 = vmatpush1.msra.mxu0 0.0
        %653 = vmatprep.subr.mxu0 0.0
        %654 = vmatpush1.msra.mxu0 0.0
        %655 = vmatprep.subr.mxu0 0.0
        %656 = vmatpush1.msra.mxu0 0.0
        %657 = vmatprep.subr.mxu0 0.0
        %658 = vmatpush1.msra.mxu0 0.0
        %659 = vmatprep.subr.mxu0 0.0
        %660 = vmatpush1.msra.mxu0 0.0
        %661 = vmatprep.subr.mxu0 0.0
        %662 = vmatpush1.msra.mxu0 0.0
        %663 = vmatprep.subr.mxu0 0.0
        %664 = vmatpush1.msra.mxu0 0.0
        %665 = vmatprep.subr.mxu0 0.0
        %666 = vmatpush1.msra.mxu0 0.0
        %667 = vmatprep.subr.mxu0 0.0
        %668 = vmatpush1.msra.mxu0 0.0
        %669 = vmatprep.subr.mxu0 0.0
        %670 = vmatpush1.msra.mxu0 0.0
        %671 = vmatprep.subr.mxu0 0.0
        %672 = vmatpush1.msra.mxu0 0.0
        %673 = vmatprep.subr.mxu0 0.0
        %674 = vmatpush1.msra.mxu0 0.0
        %675 = vmatprep.subr.mxu0 0.0
        %676 = vmatpush1.msra.mxu0 0.0
        %677 = vmatprep.subr.mxu0 0.0
        %678 = vmatpush1.msra.mxu0 0.0
        %679 = vmatprep.subr.mxu0 0.0
        %680 = vmatpush1.msra.mxu0 0.0
        %681 = vmatprep.subr.mxu0 0.0
        %682 = vmatpush1.msra.mxu0 0.0
        %683 = vmatprep.subr.mxu0 0.0
        %684 = vmatpush1.msra.mxu0 0.0
        %685 = vmatprep.subr.mxu0 0.0
        %686 = vmatpush1.msra.mxu0 0.0
        %687 = vmatprep.subr.mxu0 0.0
        %688 = vmatpush1.msra.mxu0 0.0
        %689 = vmatprep.subr.mxu0 0.0
        %690 = vmatpush1.msra.mxu0 0.0
        %691 = vmatprep.mubr.f32.mxu0 0.0
        %692 = vmatmul.mubr.f32.gmra.mrb[0].mxu0 %v622
        %v693 = vpop.f32.mrb[0].mxu0
        %v694 = vadd.f32 0.0, %v693
        %v695 = vpop.f32.mrb[0].mxu0
        %696 = vmatprep.mubr.f32.mxu0 0.0
        %697 = vmatmul.mubr.f32.gmra.mrb[0].mxu0 %v625
        %v698 = vpop.f32.mrb[0].mxu0
        %v699 = vadd.f32 0.0, %v698
        %v700 = vpop.f32.mrb[0].mxu0
        %701 = vdwg.mxu0
        %v702 = vadd.f32 %v608, %v694
        %v703 = vadd.f32 %v609, %v699
        %v704 = vmax.f32 %v702, 0.0
        %v705 = vmax.f32 %v703, 0.0
        %v706 = vlaneseq
        %v707 = vshrl.u32 %v706, 7
        %v708 = vadd.s32 %v707, 8
        %s709 = smul.u32 %s35, 8
        %s710 = ssub.s32 %s709, 1
        %v711 = vstv %s710
        %v712 = vadd.s32 %v711, %v707
        %v713 = vadd.s32 %v711, %v708
        %vm714 = vcmp.ge.s32.totalorder %v712, 0
        %vm715 = vcmp.ge.s32.totalorder %v713, 0
        %vm716 = vcmp.lt.s32.totalorder %v712, 16
        %vm717 = vcmp.lt.s32.totalorder %v713, 16
        %vm718 = vmand %vm714, %vm716
        %vm719 = vmand %vm715, %vm717
        %v720 = vsel %vm718, 1, 0
        %v721 = vsel %vm719, 1, 0
        %vm722 = vcmp.eq.s32.totalorder %v720, 1
        %vm723 = vcmp.eq.s32.totalorder %v721, 1
        %v724 = vsel %vm722, %v704, 0.0
        %v725 = vsel %vm723, %v705, 0.0
        %v726 = vld [vmem:[#allocation13] sm:$0x1]
        %v728 = vlaneseq
        %v729 = vshrl.u32 %v728, 7
        %v730 = vsub.s32 0, %v729
        %v731 = vrot.slane %v726, %v730
        %v733 = vld [vmem:[#allocation12] sm:$0xff]
        %v734 = vld [vmem:[#allocation12 + $0x8] sm:$0xff]
        %v735 = vld [vmem:[#allocation12 + $0x10] sm:$0xff]
        %v736 = vld [vmem:[#allocation12 + $0x18] sm:$0xff]
        %v737 = vld [vmem:[#allocation12 + $0x20] sm:$0xff]
        %v738 = vld [vmem:[#allocation12 + $0x28] sm:$0xff]
        %v739 = vld [vmem:[#allocation12 + $0x30] sm:$0xff]
        %v740 = vld [vmem:[#allocation12 + $0x38] sm:$0xff]
        %v742 = vsel %vm412, %v724, 0
        %744 = vmatprep.subr.mxu0 0.0
        %745 = vmatpush1.msra.mxu0 %v733
        %746 = vmatprep.subr.mxu0 0.0
        %747 = vmatpush1.msra.mxu0 %v734
        %748 = vmatprep.subr.mxu0 0.0
        %749 = vmatpush1.msra.mxu0 %v735
        %750 = vmatprep.subr.mxu0 0.0
        %751 = vmatpush1.msra.mxu0 %v736
        %752 = vmatprep.subr.mxu0 0.0
        %753 = vmatpush1.msra.mxu0 %v737
        %754 = vmatprep.subr.mxu0 0.0
        %755 = vmatpush1.msra.mxu0 %v738
        %756 = vmatprep.subr.mxu0 0.0
        %757 = vmatpush1.msra.mxu0 %v739
        %758 = vmatprep.subr.mxu0 0.0
        %759 = vmatpush1.msra.mxu0 %v740
        %760 = vmatprep.subr.mxu0 0.0
        %761 = vmatpush1.msra.mxu0 0.0
        %762 = vmatprep.subr.mxu0 0.0
        %763 = vmatpush1.msra.mxu0 0.0
        %764 = vmatprep.subr.mxu0 0.0
        %765 = vmatpush1.msra.mxu0 0.0
        %766 = vmatprep.subr.mxu0 0.0
        %767 = vmatpush1.msra.mxu0 0.0
        %768 = vmatprep.subr.mxu0 0.0
        %769 = vmatpush1.msra.mxu0 0.0
        %770 = vmatprep.subr.mxu0 0.0
        %771 = vmatpush1.msra.mxu0 0.0
        %772 = vmatprep.subr.mxu0 0.0
        %773 = vmatpush1.msra.mxu0 0.0
        %774 = vmatprep.subr.mxu0 0.0
        %775 = vmatpush1.msra.mxu0 0.0
        %776 = vmatprep.subr.mxu0 0.0
        %777 = vmatpush1.msra.mxu0 0.0
        %778 = vmatprep.subr.mxu0 0.0
        %779 = vmatpush1.msra.mxu0 0.0
        %780 = vmatprep.subr.mxu0 0.0
        %781 = vmatpush1.msra.mxu0 0.0
        %782 = vmatprep.subr.mxu0 0.0
        %783 = vmatpush1.msra.mxu0 0.0
        %784 = vmatprep.subr.mxu0 0.0
        %785 = vmatpush1.msra.mxu0 0.0
        %786 = vmatprep.subr.mxu0 0.0
        %787 = vmatpush1.msra.mxu0 0.0
        %788 = vmatprep.subr.mxu0 0.0
        %789 = vmatpush1.msra.mxu0 0.0
        %790 = vmatprep.subr.mxu0 0.0
        %791 = vmatpush1.msra.mxu0 0.0
        %792 = vmatprep.subr.mxu0 0.0
        %793 = vmatpush1.msra.mxu0 0.0
        %794 = vmatprep.subr.mxu0 0.0
        %795 = vmatpush1.msra.mxu0 0.0
        %796 = vmatprep.subr.mxu0 0.0
        %797 = vmatpush1.msra.mxu0 0.0
        %798 = vmatprep.subr.mxu0 0.0
        %799 = vmatpush1.msra.mxu0 0.0
        %800 = vmatprep.subr.mxu0 0.0
        %801 = vmatpush1.msra.mxu0 0.0
        %802 = vmatprep.subr.mxu0 0.0
        %803 = vmatpush1.msra.mxu0 0.0
        %804 = vmatprep.subr.mxu0 0.0
        %805 = vmatpush1.msra.mxu0 0.0
        %806 = vmatprep.subr.mxu0 0.0
        %807 = vmatpush1.msra.mxu0 0.0
        %808 = vmatprep.mubr.f32.mxu0 0.0
        %809 = vmatmul.mubr.f32.gmra.mrb[0].mxu0 %v742
        %v810 = vpop.f32.mrb[0].mxu0
        %v811 = vadd.f32 0.0, %v810
        %v812 = vpop.f32.mrb[0].mxu0
        %813 = vdwg.mxu0
        %v814 = vadd.f32 %v731, %v811
        %s815 = scalar_lea.vmem [#allocation12], 64
        %v816 = vld [vmem:[%s815] sm:$0xff]
        %v817 = vld [vmem:[%s815 + $0x8] sm:$0xff]
        %v818 = vld [vmem:[%s815 + $0x10] sm:$0xff]
        %v819 = vld [vmem:[%s815 + $0x18] sm:$0xff]
        %v820 = vld [vmem:[%s815 + $0x20] sm:$0xff]
        %v821 = vld [vmem:[%s815 + $0x28] sm:$0xff]
        %v822 = vld [vmem:[%s815 + $0x30] sm:$0xff]
        %v823 = vld [vmem:[%s815 + $0x38] sm:$0xff]
        %vm825 = vcmask 1046528
        %v826 = vrot.slane %v724, 1
        %v827 = vrot.slane %v725, 1
        %v828 = vsel %vm825, %v826, %v827
        %v829 = vsel %vm412, %v828, 0
        %831 = vmatprep.subr.mxu0 0.0
        %832 = vmatpush1.msra.mxu0 %v816
        %833 = vmatprep.subr.mxu0 0.0
        %834 = vmatpush1.msra.mxu0 %v817
        %835 = vmatprep.subr.mxu0 0.0
        %836 = vmatpush1.msra.mxu0 %v818
        %837 = vmatprep.subr.mxu0 0.0
        %838 = vmatpush1.msra.mxu0 %v819
        %839 = vmatprep.subr.mxu0 0.0
        %840 = vmatpush1.msra.mxu0 %v820
        %841 = vmatprep.subr.mxu0 0.0
        %842 = vmatpush1.msra.mxu0 %v821
        %843 = vmatprep.subr.mxu0 0.0
        %844 = vmatpush1.msra.mxu0 %v822
        %845 = vmatprep.subr.mxu0 0.0
        %846 = vmatpush1.msra.mxu0 %v823
        %847 = vmatprep.subr.mxu0 0.0
        %848 = vmatpush1.msra.mxu0 0.0
        %849 = vmatprep.subr.mxu0 0.0
        %850 = vmatpush1.msra.mxu0 0.0
        %851 = vmatprep.subr.mxu0 0.0
        %852 = vmatpush1.msra.mxu0 0.0
        %853 = vmatprep.subr.mxu0 0.0
        %854 = vmatpush1.msra.mxu0 0.0
        %855 = vmatprep.subr.mxu0 0.0
        %856 = vmatpush1.msra.mxu0 0.0
        %857 = vmatprep.subr.mxu0 0.0
        %858 = vmatpush1.msra.mxu0 0.0
        %859 = vmatprep.subr.mxu0 0.0
        %860 = vmatpush1.msra.mxu0 0.0
        %861 = vmatprep.subr.mxu0 0.0
        %862 = vmatpush1.msra.mxu0 0.0
        %863 = vmatprep.subr.mxu0 0.0
        %864 = vmatpush1.msra.mxu0 0.0
        %865 = vmatprep.subr.mxu0 0.0
        %866 = vmatpush1.msra.mxu0 0.0
        %867 = vmatprep.subr.mxu0 0.0
        %868 = vmatpush1.msra.mxu0 0.0
        %869 = vmatprep.subr.mxu0 0.0
        %870 = vmatpush1.msra.mxu0 0.0
        %871 = vmatprep.subr.mxu0 0.0
        %872 = vmatpush1.msra.mxu0 0.0
        %873 = vmatprep.subr.mxu0 0.0
        %874 = vmatpush1.msra.mxu0 0.0
        %875 = vmatprep.subr.mxu0 0.0
        %876 = vmatpush1.msra.mxu0 0.0
        %877 = vmatprep.subr.mxu0 0.0
        %878 = vmatpush1.msra.mxu0 0.0
        %879 = vmatprep.subr.mxu0 0.0
        %880 = vmatpush1.msra.mxu0 0.0
        %881 = vmatprep.subr.mxu0 0.0
        %882 = vmatpush1.msra.mxu0 0.0
        %883 = vmatprep.subr.mxu0 0.0
        %884 = vmatpush1.msra.mxu0 0.0
        %885 = vmatprep.subr.mxu0 0.0
        %886 = vmatpush1.msra.mxu0 0.0
        %887 = vmatprep.subr.mxu0 0.0
        %888 = vmatpush1.msra.mxu0 0.0
        %889 = vmatprep.subr.mxu0 0.0
        %890 = vmatpush1.msra.mxu0 0.0
        %891 = vmatprep.subr.mxu0 0.0
        %892 = vmatpush1.msra.mxu0 0.0
        %893 = vmatprep.subr.mxu0 0.0
        %894 = vmatpush1.msra.mxu0 0.0
        %895 = vmatprep.mubr.f32.mxu0 0.0
        %896 = vmatmul.mubr.f32.gmra.mrb[0].mxu0 %v829
        %v897 = vpop.f32.mrb[0].mxu0
        %v898 = vadd.f32 0.0, %v897
        %v899 = vpop.f32.mrb[0].mxu0
        %900 = vdwg.mxu0
        %v901 = vadd.f32 %v814, %v898
        %s902 = scalar_lea.vmem [#allocation12], 128
        %v903 = vld [vmem:[%s902] sm:$0xff]
        %v904 = vld [vmem:[%s902 + $0x8] sm:$0xff]
        %v905 = vld [vmem:[%s902 + $0x10] sm:$0xff]
        %v906 = vld [vmem:[%s902 + $0x18] sm:$0xff]
        %v907 = vld [vmem:[%s902 + $0x20] sm:$0xff]
        %v908 = vld [vmem:[%s902 + $0x28] sm:$0xff]
        %v909 = vld [vmem:[%s902 + $0x30] sm:$0xff]
        %v910 = vld [vmem:[%s902 + $0x38] sm:$0xff]
        %vm911 = vcmask 1045504
        %v912 = vrot.slane %v724, 2
        %v913 = vrot.slane %v725, 2
        %v914 = vsel %vm911, %v912, %v913
        %v915 = vsel %vm412, %v914, 0
        %917 = vmatprep.subr.mxu0 0.0
        %918 = vmatpush1.msra.mxu0 %v903
        %919 = vmatprep.subr.mxu0 0.0
        %920 = vmatpush1.msra.mxu0 %v904
        %921 = vmatprep.subr.mxu0 0.0
        %922 = vmatpush1.msra.mxu0 %v905
        %923 = vmatprep.subr.mxu0 0.0
        %924 = vmatpush1.msra.mxu0 %v906
        %925 = vmatprep.subr.mxu0 0.0
        %926 = vmatpush1.msra.mxu0 %v907
        %927 = vmatprep.subr.mxu0 0.0
        %928 = vmatpush1.msra.mxu0 %v908
        %929 = vmatprep.subr.mxu0 0.0
        %930 = vmatpush1.msra.mxu0 %v909
        %931 = vmatprep.subr.mxu0 0.0
        %932 = vmatpush1.msra.mxu0 %v910
        %933 = vmatprep.subr.mxu0 0.0
        %934 = vmatpush1.msra.mxu0 0.0
        %935 = vmatprep.subr.mxu0 0.0
        %936 = vmatpush1.msra.mxu0 0.0
        %937 = vmatprep.subr.mxu0 0.0
        %938 = vmatpush1.msra.mxu0 0.0
        %939 = vmatprep.subr.mxu0 0.0
        %940 = vmatpush1.msra.mxu0 0.0
        %941 = vmatprep.subr.mxu0 0.0
        %942 = vmatpush1.msra.mxu0 0.0
        %943 = vmatprep.subr.mxu0 0.0
        %944 = vmatpush1.msra.mxu0 0.0
        %945 = vmatprep.subr.mxu0 0.0
        %946 = vmatpush1.msra.mxu0 0.0
        %947 = vmatprep.subr.mxu0 0.0
        %948 = vmatpush1.msra.mxu0 0.0
        %949 = vmatprep.subr.mxu0 0.0
        %950 = vmatpush1.msra.mxu0 0.0
        %951 = vmatprep.subr.mxu0 0.0
        %952 = vmatpush1.msra.mxu0 0.0
        %953 = vmatprep.subr.mxu0 0.0
        %954 = vmatpush1.msra.mxu0 0.0
        %955 = vmatprep.subr.mxu0 0.0
        %956 = vmatpush1.msra.mxu0 0.0
        %957 = vmatprep.subr.mxu0 0.0
        %958 = vmatpush1.msra.mxu0 0.0
        %959 = vmatprep.subr.mxu0 0.0
        %960 = vmatpush1.msra.mxu0 0.0
        %961 = vmatprep.subr.mxu0 0.0
        %962 = vmatpush1.msra.mxu0 0.0
        %963 = vmatprep.subr.mxu0 0.0
        %964 = vmatpush1.msra.mxu0 0.0
        %965 = vmatprep.subr.mxu0 0.0
        %966 = vmatpush1.msra.mxu0 0.0
        %967 = vmatprep.subr.mxu0 0.0
        %968 = vmatpush1.msra.mxu0 0.0
        %969 = vmatprep.subr.mxu0 0.0
        %970 = vmatpush1.msra.mxu0 0.0
        %971 = vmatprep.subr.mxu0 0.0
        %972 = vmatpush1.msra.mxu0 0.0
        %973 = vmatprep.subr.mxu0 0.0
        %974 = vmatpush1.msra.mxu0 0.0
        %975 = vmatprep.subr.mxu0 0.0
        %976 = vmatpush1.msra.mxu0 0.0
        %977 = vmatprep.subr.mxu0 0.0
        %978 = vmatpush1.msra.mxu0 0.0
        %979 = vmatprep.subr.mxu0 0.0
        %980 = vmatpush1.msra.mxu0 0.0
        %981 = vmatprep.mubr.f32.mxu0 0.0
        %982 = vmatmul.mubr.f32.gmra.mrb[0].mxu0 %v915
        %v983 = vpop.f32.mrb[0].mxu0
        %v984 = vadd.f32 0.0, %v983
        %v985 = vpop.f32.mrb[0].mxu0
        %986 = vdwg.mxu0
        %v987 = vadd.f32 %v901, %v984
        %s988 = sld [smem:[#allocation3]]
        %v989 = vstv %s988
        %v990 = vmul.f32 %v987, %v989
        %v991 = vadd.f32 %v990, %v408
        %992 = vst.msk [vmem:[%s407] sm:$0xff] %vm412, %v991
        %s993 = sand.u32 %s213, 1
        %s994 = scalar_lea.sflag [#allocation6], %s993
        %s995 = sand.u32 %s213, 1
        %s996 = smul.addr %s995, 8
        %s997 = scalar_lea.vmem [#allocation15], %s996
        // Predicated region
        $region73: #{tpu_custom_call.1} parent=47 // pred_check
          %p998 = pneg %p223
        $region74: #{tpu_custom_call.1} parent=47 // pred_check_branch
          %1000 = sbr.rel (%p998) target = $region76
        $region75: #{tpu_custom_call.1} parent=47 // pred_region
          %s1002 = ssub.s32 128, 128
          %1003 = vsyncadd %s994, %s1002
          %s1004 = smul.addr %s34, 2
          %s1005 = sadd.s32 %s35, %s1004
          %s1006 = smul.addr %s1005, 128
          %s1007 = scalar_lea.hbm %s7, %s1006
          %s1009 = sshll.u32 %s997, 4
          %s1010 = int_to_ptr.vmem [resolvable:$true] %s1009
          %1012 = dma.vmem_to_hbm [thread:$0]  %s1010, 128, %s1007, %s994
        $region76: #{tpu_custom_call.1} parent=47 // pred_fallthru
          _
      $region48: #{tpu_custom_call.1} parent=5 // pred_fallthru
        _
      %p1013 = scmp.le.s32.totalorder 2, %s25
      // Predicated region
      $region77: #{tpu_custom_call.1} parent=5 // pred_check
        %p1014 = pneg %p1013
      $region78: #{tpu_custom_call.1} parent=5 // pred_check_branch
        %1016 = sbr.rel (%p1014) target = $region80
      $region79: #{tpu_custom_call.1} parent=5 // pred_region
        %s1017 = ssub.s32 %s25, 2
        // Predicated region
        $region81: #{tpu_custom_call.1} parent=79 // pred_check
          %p1018 = pneg %p229
        $region82: #{tpu_custom_call.1} parent=79 // pred_check_branch
          %1020 = sbr.rel (%p1018) target = $region84
        $region83: #{tpu_custom_call.1} parent=79 // pred_region
          %s1021 = sand.u32 %s214, 1
          %s1022 = scalar_lea.sflag [#allocation6], %s1021
          %s1023 = sand.u32 %s214, 1
          %s1024 = smul.addr %s1023, 8
          %s1025 = scalar_lea.vmem [#allocation15], %s1024
          %1026 = dma.done %s1022, 128
        $region84: #{tpu_custom_call.1} parent=79 // pred_fallthru
          _
      $region80: #{tpu_custom_call.1} parent=5 // pred_fallthru
        _
    $region6: #{tpu_custom_call.1} parent=1 // loop_footer
      %s29 = sadd.s32 1, %s25
    $region7: #{tpu_custom_call.1} parent=1 // loop_footer_branch
      %24 = sbr.rel target = $region3
    $region8: #{tpu_custom_call.1} parent=1 // loop_exit
      _
    %1027 = vsyncpa [#allocation5], 1
    %s1028 = scalar_lea.sflag [#allocation5], 1
    %1029 = vsyncpa %s1028, 1
    %1030 = vsyncpa [#allocation8], 1
    %s1031 = scalar_lea.sflag [#allocation8], 1
    %1032 = vsyncpa %s1031, 1
    %1033 = vsyncpa [#allocation11], 1
    %1034 = vsyncpa [#allocation14], 1
    %1035 = vsyncpa [#allocation6], 1
    %s1036 = scalar_lea.sflag [#allocation6], 1
    %1037 = vsyncpa %s1036, 1

</llo_original>
